<compile_context>
chip_gen: v5e
topology: v5e:2x2
jax: 0.10.0
libtpu: 0.0.40
codegen_flags: <defaults>
</compile_context>

<pallas_src>
import functools

import jax
import jax.numpy as jnp
from jax import lax
from jax.experimental import pallas as pl
from jax.experimental.pallas import tpu as pltpu


# ---------------------------------------------------------------------------
# Trace-time hardware queries (conservative fallbacks if unavailable).
# ---------------------------------------------------------------------------

def _tpu_vmem_capacity_bytes():
    try:
        return int(pltpu.get_tpu_info().vmem_capacity_bytes)
    except Exception:
        return 64 * 1024 * 1024  # conservative: fits every TPU generation


def _is_v5e():
    try:
        kind = jax.devices()[0].device_kind.lower()
        return ("v5 lite" in kind) or ("v5e" in kind) or ("v5litepod" in kind)
    except Exception:
        return False


def _sublane_multiple(dtype):
    # f32 packs 8 sublanes per vreg, bf16 packs 16, int8/fp8 pack 32.
    return {4: 8, 2: 16, 1: 32}.get(jnp.dtype(dtype).itemsize, 8)


def _round_up(x, m):
    return ((x + m - 1) // m) * m


# ---------------------------------------------------------------------------
# Per-step VMEM working-set estimates (double-buffered I/O + f32 temporaries).
# ---------------------------------------------------------------------------

def _single_pass_bytes(tq, lk, d, in_isz, out_isz):
    return (2 * tq * d * in_isz          # q tile (double buffered)
            + 2 * lk * d * in_isz        # full keys (double buffered)
            + 2 * tq * lk * out_isz      # output tile (double buffered)
            + 2 * tq * lk * 4)           # f32 score / exp temporaries


def _two_pass_bytes(tq, tk, d, in_isz, out_isz):
    return (2 * tq * d * in_isz + 2 * tk * d * in_isz
            + 2 * tq * tk * out_isz      # pass-2 output tile
            + 2 * tq * tk * 4            # f32 score / exp temporaries
            + 16 * tq * 4)               # row-stat blocks + scratch


_TILE_CANDIDATES = (1024, 512, 384, 256, 192, 128, 96, 64, 48, 32, 24, 16, 8)


def _pick_tile_q_single(lq, lk, d, in_isz, out_isz, sublane, budget, cap):
    if lq <= cap and _single_pass_bytes(lq, lk, d, in_isz, out_isz) <= budget:
        return lq                        # one full tile, no edge masking needed
    cands = [t for t in _TILE_CANDIDATES
             if t <= cap and t % sublane == 0
             and _single_pass_bytes(t, lk, d, in_isz, out_isz) <= budget]
    for t in cands:                      # prefer an exact divisor (no edge tile)
        if lq % t == 0:
            return t
    return cands[0] if cands else sublane


def _pick_tile_k(lk, d, isz, budget):
    for tk in (4096, 2048, 1024, 512, 256, 128):
        if tk <= lk and _two_pass_bytes(256, tk, d, isz, isz) <= budget:
            return tk
    return 128


def _pick_tile_q_two(lq, tk, d, in_isz, out_isz, sublane, budget, cap):
    if lq <= cap and _two_pass_bytes(lq, tk, d, in_isz, out_isz) <= budget:
        return lq
    cands = [t for t in _TILE_CANDIDATES
             if t <= cap and t % sublane == 0
             and _two_pass_bytes(t, tk, d, in_isz, out_isz) <= budget]
    for t in cands:
        if lq % t == 0:
            return t
    return cands[0] if cands else sublane


# ---------------------------------------------------------------------------
# Kernels.
# ---------------------------------------------------------------------------

def _sdpa_kernel(q_ref, k_ref, o_ref, *, exp_dtype):
    # q_ref: (TQ, D)   k_ref: (LK, D)   o_ref: (TQ, LK)
    # Contract on D (no explicit k.T -> no XLU transpose); f32 MXU accumulation.
    s = lax.dot_general(q_ref[...], k_ref[...],
                        dimension_numbers=(((1,), (1,)), ((), ())),
                        preferred_element_type=jnp.float32)

    m = jnp.max(s, axis=-1, keepdims=True)
    shifted = s - m
    if exp_dtype == jnp.float32:
        e = jnp.exp(shifted)
    else:  # bf16 exp on v6e/v7x EUP when inputs are bf16
        e = jnp.exp(shifted.astype(exp_dtype)).astype(jnp.float32)
    denom = jnp.sum(e, axis=-1, keepdims=True)

    # EUP approximate reciprocal on the (TQ,1) column + one Newton step (cheap,
    # restores ~f32 accuracy), then a VPU broadcast-multiply: no full-tile divide.
    inv = pl.reciprocal(denom, approx=True)
    inv = inv * (2.0 - denom * inv)
    o_ref[...] = (e * inv).astype(o_ref.dtype)


def _stats_kernel(q_ref, k_ref, m_ref, l_ref, m_sc, l_sc, *, lk, tk):
    # Pass 1 of the k-tiled path: online row max / sum(exp) over key tiles.
    kj = pl.program_id(2)

    @pl.when(kj == 0)
    def _():
        m_sc[...] = jnp.full_like(m_sc[...], -jnp.inf)
        l_sc[...] = jnp.zeros_like(l_sc[...])

    s = lax.dot_general(q_ref[...], k_ref[...],
                        dimension_numbers=(((1,), (1,)), ((), ())),
                        preferred_element_type=jnp.float32)
    if lk % tk != 0:  # mask padded key columns of the trailing tile
        col = kj * tk + lax.broadcasted_iota(jnp.int32, s.shape, 1)
        s = jnp.where(col < lk, s, -jnp.inf)

    m_prev = m_sc[...]
    m_new = jnp.maximum(m_prev, jnp.max(s, axis=-1, keepdims=True))
    l_sc[...] = (l_sc[...] * jnp.exp(m_prev - m_new)
                 + jnp.sum(jnp.exp(s - m_new), axis=-1, keepdims=True))
    m_sc[...] = m_new

    @pl.when(kj == pl.num_programs(2) - 1)
    def _():
        m_ref[...] = m_sc[...]
        l_ref[...] = l_sc[...]


def _normalize_kernel(q_ref, k_ref, m_ref, l_ref, o_ref, *, exp_dtype):
    # Pass 2: recompute scores per (tq, tk) tile and write normalized probs.
    s = lax.dot_general(q_ref[...], k_ref[...],
                        dimension_numbers=(((1,), (1,)), ((), ())),
                        preferred_element_type=jnp.float32)
    shifted = s - m_ref[...]
    if exp_dtype == jnp.float32:
        e = jnp.exp(shifted)
    else:
        e = jnp.exp(shifted.astype(exp_dtype)).astype(jnp.float32)
    denom = l_ref[...]
    inv = pl.reciprocal(denom, approx=True)
    inv = inv * (2.0 - denom * inv)
    o_ref[...] = (e * inv).astype(o_ref.dtype)


# ---------------------------------------------------------------------------
# pallas_call wrappers.
# ---------------------------------------------------------------------------

def _single_pass(q, k, tq, exp_dtype, vmem_limit):
    B, Lq, D = q.shape
    _, Lk, _ = k.shape
    isz = jnp.dtype(q.dtype).itemsize
    cost = pl.CostEstimate(
        flops=2 * B * Lq * Lk * D,
        transcendentals=B * Lq * Lk,
        bytes_accessed=(B * Lq * D + B * Lk * D + B * Lq * Lk) * isz)

    return pl.pallas_call(
        functools.partial(_sdpa_kernel, exp_dtype=exp_dtype),
        out_shape=jax.ShapeDtypeStruct((B, Lq, Lk), q.dtype),
        grid_spec=pltpu.PrefetchScalarGridSpec(
            num_scalar_prefetch=0,
            grid=(B, pl.cdiv(Lq, tq)),
            in_specs=[
                pl.BlockSpec((None, tq, D), lambda b, i: (b, i, 0)),   # q tile
                pl.BlockSpec((None, Lk, D), lambda b, i: (b, 0, 0)),   # full keys
            ],
            out_specs=pl.BlockSpec((None, tq, Lk), lambda b, i: (b, i, 0)),
        ),
        compiler_params=pltpu.CompilerParams(
            dimension_semantics=("parallel", "parallel"),
            vmem_limit_bytes=vmem_limit),
        cost_estimate=cost,
    )(q, k)


def _two_pass(q, k, tq, tk, exp_dtype, vmem_limit):
    B, Lq, D = q.shape
    _, Lk, _ = k.shape
    isz = jnp.dtype(q.dtype).itemsize
    nq, nk = pl.cdiv(Lq, tq), pl.cdiv(Lk, tk)

    stats_cost = pl.CostEstimate(
        flops=2 * B * Lq * Lk * D,
        transcendentals=B * Lq * Lk,
        bytes_accessed=(B * Lq * D * nk + B * Lk * D) * isz + 2 * B * Lq * 4)

    m, l = pl.pallas_call(
        functools.partial(_stats_kernel, lk=Lk, tk=tk),
        out_shape=(jax.ShapeDtypeStruct((B, Lq, 1), jnp.float32),
                   jax.ShapeDtypeStruct((B, Lq, 1), jnp.float32)),
        grid_spec=pltpu.PrefetchScalarGridSpec(
            num_scalar_prefetch=0,
            grid=(B, nq, nk),
            in_specs=[
                pl.BlockSpec((None, tq, D), lambda b, i, j: (b, i, 0)),
                pl.BlockSpec((None, tk, D), lambda b, i, j: (b, j, 0)),
            ],
            out_specs=(
                pl.BlockSpec((None, tq, 1), lambda b, i, j: (b, i, 0)),
                pl.BlockSpec((None, tq, 1), lambda b, i, j: (b, i, 0)),
            ),
            scratch_shapes=[pltpu.VMEM((tq, 1), jnp.float32),
                            pltpu.VMEM((tq, 1), jnp.float32)]),
        compiler_params=pltpu.CompilerParams(
            dimension_semantics=("parallel", "parallel", "arbitrary"),
            vmem_limit_bytes=vmem_limit),
        cost_estimate=stats_cost,
    )(q, k)

    norm_cost = pl.CostEstimate(
        flops=2 * B * Lq * Lk * D,
        transcendentals=B * Lq * Lk,
        bytes_accessed=(B * Lq * D * nk + B * Lk * D + B * Lq * Lk) * isz)

    attn = pl.pallas_call(
        functools.partial(_normalize_kernel, exp_dtype=exp_dtype),
        out_shape=jax.ShapeDtypeStruct((B, Lq, Lk), q.dtype),
        grid_spec=pltpu.PrefetchScalarGridSpec(
            num_scalar_prefetch=0,
            grid=(B, nq, nk),
            in_specs=[
                pl.BlockSpec((None, tq, D), lambda b, i, j: (b, i, 0)),
                pl.BlockSpec((None, tk, D), lambda b, i, j: (b, j, 0)),
                pl.BlockSpec((None, tq, 1), lambda b, i, j: (b, i, 0)),
                pl.BlockSpec((None, tq, 1), lambda b, i, j: (b, i, 0)),
            ],
            out_specs=pl.BlockSpec((None, tq, tk), lambda b, i, j: (b, i, j)),
        ),
        compiler_params=pltpu.CompilerParams(
            dimension_semantics=("parallel", "parallel", "arbitrary"),
            vmem_limit_bytes=vmem_limit),
        cost_estimate=norm_cost,
    )(q, k, m, l)
    return attn


@functools.partial(jax.jit, static_argnames=("k_tile", "max_tile_q"))
def scaled_dot_product_attention(q, k, v, scale=None, attn_mask=None, *,
                                 k_tile=None, max_tile_q=None):
    """Returns (v, softmax(q @ k^T, axis=-1)) — matches the PyTorch module.

    `scale` and `attn_mask` are accepted but ignored and `v` is returned
    unchanged, exactly like the reference forward.  Dropout p=0.0 -> identity.
    `k_tile` / `max_tile_q` are optional static overrides for the key / query
    tile sizes (None = auto, VMEM-budget-aware).
    """
    del scale, attn_mask  # unused by the original module's forward body

    B, Lq, D = q.shape
    _, Lk, _ = k.shape
    in_isz = jnp.dtype(q.dtype).itemsize
    out_isz = in_isz
    sub = _sublane_multiple(q.dtype)

    phys = _tpu_vmem_capacity_bytes()
    budget = int(phys * 0.45)                            # per-step working set
    vmem_limit = int(min(phys * 0.75, phys - (8 << 20))) # scoped limit w/ headroom
    cap = 256 if phys <= (64 << 20) else 512             # smaller q tiles on v7x
    if max_tile_q is not None:
        cap = min(cap, max_tile_q)

    # bf16 exp on v6e/v7x only (v5e EUP has no bf16). No-op for f32 inputs.
    exp_dtype = (jnp.bfloat16
                 if (q.dtype == jnp.bfloat16 and not _is_v5e())
                 else jnp.float32)

    use_two_pass = k_tile is not None
    if not use_two_pass and Lk >= 256:
        # If even a modest (<=128 row) q tile blows the budget, tile keys too.
        probe = min(_round_up(min(Lq, 128), sub), cap)
        if _single_pass_bytes(probe, Lk, D, in_isz, out_isz) > budget:
            use_two_pass = True

    if use_two_pass:
        tk = k_tile if k_tile is not None else _pick_tile_k(Lk, D, in_isz, budget)
        tq = _pick_tile_q_two(Lq, tk, D, in_isz, out_isz, sub, budget, cap)
        attention = _two_pass(q, k, tq, tk, exp_dtype, vmem_limit)
    else:
        tq = _pick_tile_q_single(Lq, Lk, D, in_isz, out_isz, sub, budget, cap)
        attention = _single_pass(q, k, tq, exp_dtype, vmem_limit)

    return v, attention


def reference_sdpa(q, k, v):
    s = jnp.einsum("bqd,bkd->bqk", q, k, precision=jax.lax.Precision.HIGHEST)
    return v, jax.nn.softmax(s, axis=-1)


if __name__ == "__main__":
    key = jax.random.PRNGKey(0)
    keys = jax.random.split(key, 9)

    # 1) Small shapes consistent with the module: batch=2, seq=8, dim=16.
    B, L, D = 2, 8, 16
    q = jax.random.normal(keys[0], (B, L, D), dtype=jnp.float32)
    k = jax.random.normal(keys[1], (B, L, D), dtype=jnp.float32)
    v = jax.random.normal(keys[2], (B, L, D), dtype=jnp.float32)

    out_v, attn = scaled_dot_product_attention(q, k, v)
    attn = jax.block_until_ready(attn)
    out_v = jax.block_until_ready(out_v)
    ref_v, ref_attn = reference_sdpa(q, k, v)
    assert attn.shape == (B, L, L)
    assert jnp.allclose(out_v, ref_v), "v passthrough mismatch"
    assert jnp.allclose(attn, ref_attn, atol=1e-4, rtol=1e-4), "attention mismatch"
    assert jnp.allclose(jnp.sum(attn, axis=-1), 1.0, atol=1e-4)

    # 2) Non-divisible Lq -> cdiv grid with a masked edge q tile.
    B2, Lq2, Lk2, D2 = 2, 20, 20, 16
    q2 = jax.random.normal(keys[3], (B2, Lq2, D2), dtype=jnp.float32)
    k2 = jax.random.normal(keys[4], (B2, Lk2, D2), dtype=jnp.float32)
    v2 = jax.random.normal(keys[5], (B2, Lq2, D2), dtype=jnp.float32)
    _, attn2 = scaled_dot_product_attention(q2, k2, v2, max_tile_q=16)
    attn2 = jax.block_until_ready(attn2)
    _, ref2 = reference_sdpa(q2, k2, v2)
    assert jnp.allclose(attn2, ref2, atol=1e-4, rtol=1e-4), "edge-tile mismatch"

    # 3) k-tiled two-pass path (forced) with a masked trailing key tile.
    B3, Lq3, Lk3, D3 = 2, 64, 200, 32
    q3 = jax.random.normal(keys[6], (B3, Lq3, D3), dtype=jnp.float32)
    k3 = jax.random.normal(keys[7], (B3, Lk3, D3), dtype=jnp.float32)
    v3 = jax.random.normal(keys[8], (B3, Lq3, D3), dtype=jnp.float32)
    _, attn3 = scaled_dot_product_attention(q3, k3, v3, k_tile=128)
    attn3 = jax.block_until_ready(attn3)
    _, ref3 = reference_sdpa(q3, k3, v3)
    assert jnp.allclose(attn3, ref3, atol=1e-4, rtol=1e-4), "two-pass mismatch"
    assert jnp.allclose(jnp.sum(attn3, axis=-1), 1.0, atol=1e-4)

    print("KERNEL_OK")
</pallas_src>

<mosaic_0001>
module attributes {stable_mosaic.version = 11 : i64} {
  func.func @_sdpa_kernel(%arg0: i32, %arg1: i32, %arg2: memref<1x8x16xf32, #tpu.memory_space<vmem>>, %arg3: memref<1x8x16xf32, #tpu.memory_space<vmem>>, %arg4: memref<1x8x8xf32, #tpu.memory_space<vmem>>) attributes {dimension_semantics = [#tpu.dimension_semantics<parallel>, #tpu.dimension_semantics<parallel>], iteration_bounds = array<i64: 2, 1>, scalar_prefetch = 0 : i64, scratch_operands = 0 : i64, tpu.core_type = #tpu.core_type<tc>, window_params = [{transform_indices = @transform_0, window_bounds = array<i64: 1, 8, 16>}, {transform_indices = @transform_1, window_bounds = array<i64: 1, 8, 16>}, {transform_indices = @transform_2, window_bounds = array<i64: 1, 8, 8>}]} {
    %c0 = arith.constant 0 : index
    %c0_0 = arith.constant 0 : index
    %c0_1 = arith.constant 0 : index
    %0 = vector.load %arg2[%c0, %c0_0, %c0_1] : memref<1x8x16xf32, #tpu.memory_space<vmem>>, vector<1x8x16xf32>
    %1 = vector.shape_cast %0 : vector<1x8x16xf32> to vector<8x16xf32>
    %c0_2 = arith.constant 0 : index
    %c0_3 = arith.constant 0 : index
    %c0_4 = arith.constant 0 : index
    %2 = vector.load %arg3[%c0_2, %c0_3, %c0_4] : memref<1x8x16xf32, #tpu.memory_space<vmem>>, vector<1x8x16xf32>
    %3 = vector.shape_cast %2 : vector<1x8x16xf32> to vector<8x16xf32>
    %cst = arith.constant dense<0.000000e+00> : vector<8x8xf32>
    %4 = tpu.matmul %1, %3, %cst {dimension_numbers = #tpu.dot_dimension_numbers<[1], [1], [0], [0], [0, 0, 1, 0], [], []>} : vector<8x16xf32>, vector<8x16xf32>, vector<8x8xf32> -> vector<8x8xf32>
    %cst_5 = arith.constant dense<0xFF800000> : vector<8xf32>
    %5 = vector.multi_reduction <maximumf>, %4, %cst_5 [1] : vector<8x8xf32> to vector<8xf32>
    %6 = vector.shape_cast %5 : vector<8xf32> to vector<8x1xf32>
    %7 = vector.broadcast %6 : vector<8x1xf32> to vector<8x8xf32>
    %8 = arith.subf %4, %7 : vector<8x8xf32>
    %9 = math.exp %8 : vector<8x8xf32>
    %cst_6 = arith.constant dense<0.000000e+00> : vector<8xf32>
    %10 = vector.multi_reduction <add>, %9, %cst_6 [1] : vector<8x8xf32> to vector<8xf32>
    %11 = vector.shape_cast %10 : vector<8xf32> to vector<8x1xf32>
    %12 = tpu.reciprocal %11 {approx = true} : vector<8x1xf32> -> vector<8x1xf32>
    %13 = arith.mulf %11, %12 : vector<8x1xf32>
    %cst_7 = arith.constant 2.000000e+00 : f32
    %14 = vector.broadcast %cst_7 : f32 to vector<8x1xf32>
    %15 = arith.subf %14, %13 : vector<8x1xf32>
    %16 = arith.mulf %12, %15 : vector<8x1xf32>
    %17 = vector.broadcast %16 : vector<8x1xf32> to vector<8x8xf32>
    %18 = arith.mulf %9, %17 : vector<8x8xf32>
    %c0_8 = arith.constant 0 : index
    %c0_9 = arith.constant 0 : index
    %c0_10 = arith.constant 0 : index
    %19 = vector.load %arg4[%c0_8, %c0_9, %c0_10] : memref<1x8x8xf32, #tpu.memory_space<vmem>>, vector<1x8x8xf32>
    %20 = vector.shape_cast %19 : vector<1x8x8xf32> to vector<8x8xf32>
    %21 = vector.shape_cast %18 : vector<8x8xf32> to vector<1x8x8xf32>
    tpu.vector_store %arg4[%c0_8, %c0_9, %c0_10], %21 {strides = array<i32>} : memref<1x8x8xf32, #tpu.memory_space<vmem>>, vector<1x8x8xf32>,
    return
  }
  func.func @transform_0(%arg0: i32, %arg1: i32) -> (i32, i32, i32) {
    %c0_i32 = arith.constant 0 : i32
    %c0_i32_0 = arith.constant 0 : i32
    return %arg0, %arg1, %c0_i32 : i32, i32, i32
  }
  func.func @transform_1(%arg0: i32, %arg1: i32) -> (i32, i32, i32) {
    %c0_i32 = arith.constant 0 : i32
    %c0_i32_0 = arith.constant 0 : i32
    %c0_i32_1 = arith.constant 0 : i32
    return %arg0, %c0_i32, %c0_i32_0 : i32, i32, i32
  }
  func.func @transform_2(%arg0: i32, %arg1: i32) -> (i32, i32, i32) {
    %c0_i32 = arith.constant 0 : i32
    %c0_i32_0 = arith.constant 0 : i32
    return %arg0, %arg1, %c0_i32 : i32, i32, i32
  }
}

</mosaic_0001>

<llo_original>
// kernel: scaled_dot_product_attention.1
$region0: #{scaled_dot_product_attention.1}
  #allocation0 [shape = 'u32[]', space=smem, size = 0x4, offset = 0x4, fixed_abs, tag = 'smem constant byte address 0x4 - core index']
  #allocation1 [shape = 'u32[72,128]{1,0:T(1,128)}', space=vmem, size = 0x9000, scoped, tag = 'internal scratch']
  %s0 = inlined_call_operand.hbm [shape: f32[2,8,16], index: 0, kind: input, shape index: {}]
  %s1 = inlined_call_operand.hbm [shape: f32[2,8,16], index: 1, kind: input, shape index: {}]
  %s2 = inlined_call_operand.hbm [shape: f32[2,8,8], index: 2, kind: output, shape index: {}]
  %s3 = sld [smem:[#allocation0]]
  $region49: #{scaled_dot_product_attention.1} parent=0
    _
  %s5 = ssub.s32 1, %s3
  %s6 = scalar_select 0, %s5, %s3
  $region1: #{scaled_dot_product_attention.1} parent=0
    #allocation2 [shape = 'u8[8192]{0}', space=vmem, size = 0x2000, scoped, tag = 'input window, operand 0']
    #allocation3 [shape = 's32[2]{0}', space=sflag, size = 0x8, scoped, tag = 'scoped memory for scaled_dot_product_attention.1']
    #allocation4 [shape = 's32[2]{0}', space=sflag, size = 0x8, scoped, tag = 'scoped memory for scaled_dot_product_attention.1']
    #allocation5 [shape = 'u8[8192]{0}', space=vmem, size = 0x2000, scoped, tag = 'input window, operand 1']
    #allocation6 [shape = 's32[2]{0}', space=sflag, size = 0x8, scoped, tag = 'scoped memory for scaled_dot_product_attention.1']
    #allocation7 [shape = 'u8[8192]{0}', space=vmem, size = 0x2000, scoped, tag = 'output window, operand 0']
    %7 = vsyncpa [#allocation3], 0
    %s8 = scalar_lea.sflag [#allocation3], 1
    %9 = vsyncpa %s8, 0
    %10 = vsyncpa [#allocation6], 0
    %s11 = scalar_lea.sflag [#allocation6], 1
    %12 = vsyncpa %s11, 0
    %13 = vsyncpa [#allocation4], 0
    %s14 = scalar_lea.sflag [#allocation4], 1
    %15 = vsyncpa %s14, 0
    loop: start=0, step=1, limit=4
    $region2: #{scaled_dot_product_attention.1} parent=1 // loop_pre_header
      _
    $region3: #{scaled_dot_product_attention.1} parent=1 // loop_header
      %s17 = sphi 0, %s21
      %p18 = scmp.ge.s32.totalorder %s17, 4
      %s24 = sphi 0, %s36
      %s25 = sphi 0, %s32
      %s26 = sphi 0, %s24
      %s27 = sphi 0, %s25
      %s28 = sphi 0, %s26
      %s29 = sphi 0, %s27
      %s41 = sphi 0, %s43
      %s44 = sphi 0, %s41
      %s45 = sphi 0, %s44
      %s61 = sphi 0, %s45
      %s67 = sphi 0, %s69
      %s70 = sphi 0, %s67
      %s71 = sphi 0, %s70
      %s87 = sphi 0, %s71
      %s95 = sphi 0, %s97
      %s98 = sphi 0, %s95
      %s99 = sphi 0, %s98
      %s115 = sphi 0, %s99
    $region4: #{scaled_dot_product_attention.1} parent=1 // loop_header_branch
      %20 = sbr.rel (%p18) target = $region8
    $region5: #{scaled_dot_product_attention.1} parent=1 // loop_body
      %s22 = ssub.s32 %s17, 1
      %s23 = ssub.s32 %s17, 2
      %s30 = sadd.s32 1, %s25
      %p31 = scmp.ge.s32.totalorder %s30, 1
      %s32 = scalar_select %p31, 0, %s30
      %s33 = sadd.s32 1, %s24
      %s34 = scalar_select %p31, %s33, %s24
      %p35 = scmp.ge.s32.totalorder %s34, 2
      %s36 = scalar_select %p35, 0, %s34
      %s37 = ssub.s32 %s24, %s36
      %s38 = ssub.s32 %s25, %s32
      %s39 = sor.u32 %s37, %s38
      %p40 = scmp.eq.s32.totalorder %s39, 0
      %s42 = sadd.s32 %s41, 1
      %s43 = scalar_select %p40, %s41, %s42
      %p46 = pneg %p40
      %p47 = scmp.eq.s32.totalorder %s17, 1
      %p48 = por %p46, %p47
      %p49 = scmp.ne.s32.totalorder %s41, %s44
      %p50 = scmp.eq.s32.totalorder %s17, 0
      %p51 = por %p49, %p50
      %p52 = scmp.ne.s32.totalorder %s41, %s44
      %p53 = scmp.eq.s32.totalorder %s22, 1
      %p54 = por %p52, %p53
      %p55 = scmp.ne.s32.totalorder %s44, %s45
      %p56 = scmp.eq.s32.totalorder %s22, 0
      %p57 = por %p55, %p56
      %p58 = scmp.ne.s32.totalorder %s44, %s45
      %p59 = scmp.eq.s32.totalorder %s23, 1
      %p60 = por %p58, %p59
      %p62 = scmp.ne.s32.totalorder %s45, %s61
      %p63 = scmp.eq.s32.totalorder %s23, 0
      %p64 = por %p62, %p63
      %s65 = ssub.s32 %s24, %s36
      %p66 = scmp.eq.s32.totalorder %s65, 0
      %s68 = sadd.s32 %s67, 1
      %s69 = scalar_select %p66, %s67, %s68
      %p72 = pneg %p66
      %p73 = scmp.eq.s32.totalorder %s17, 1
      %p74 = por %p72, %p73
      %p75 = scmp.ne.s32.totalorder %s67, %s70
      %p76 = scmp.eq.s32.totalorder %s17, 0
      %p77 = por %p75, %p76
      %p78 = scmp.ne.s32.totalorder %s67, %s70
      %p79 = scmp.eq.s32.totalorder %s22, 1
      %p80 = por %p78, %p79
      %p81 = scmp.ne.s32.totalorder %s70, %s71
      %p82 = scmp.eq.s32.totalorder %s22, 0
      %p83 = por %p81, %p82
      %p84 = scmp.ne.s32.totalorder %s70, %s71
      %p85 = scmp.eq.s32.totalorder %s23, 1
      %p86 = por %p84, %p85
      %p88 = scmp.ne.s32.totalorder %s71, %s87
      %p89 = scmp.eq.s32.totalorder %s23, 0
      %p90 = por %p88, %p89
      %s91 = ssub.s32 %s24, %s36
      %s92 = ssub.s32 %s25, %s32
      %s93 = sor.u32 %s91, %s92
      %p94 = scmp.eq.s32.totalorder %s93, 0
      %s96 = sadd.s32 %s95, 1
      %s97 = scalar_select %p94, %s95, %s96
      %p100 = pneg %p94
      %p101 = scmp.eq.s32.totalorder %s17, 1
      %p102 = por %p100, %p101
      %p103 = scmp.ne.s32.totalorder %s95, %s98
      %p104 = scmp.eq.s32.totalorder %s17, 0
      %p105 = por %p103, %p104
      %p106 = scmp.ne.s32.totalorder %s95, %s98
      %p107 = scmp.eq.s32.totalorder %s22, 1
      %p108 = por %p106, %p107
      %p109 = scmp.ne.s32.totalorder %s98, %s99
      %p110 = scmp.eq.s32.totalorder %s22, 0
      %p111 = por %p109, %p110
      %p112 = scmp.ne.s32.totalorder %s98, %s99
      %p113 = scmp.eq.s32.totalorder %s23, 1
      %p114 = por %p112, %p113
      %p116 = scmp.ne.s32.totalorder %s99, %s115
      %p117 = scmp.eq.s32.totalorder %s23, 0
      %p118 = por %p116, %p117
      %p119 = scmp.le.s32.totalorder 1, %s17
      %p120 = scmp.lt.s32.totalorder %s17, 3
      %p121 = pnand %p119, %p120
      %p122 = pneg %p121
      // Predicated region
      $region9: #{scaled_dot_product_attention.1} parent=5 // pred_check
        _
      $region10: #{scaled_dot_product_attention.1} parent=5 // pred_check_branch
        %124 = sbr.rel (%p121) target = $region12
      $region11: #{scaled_dot_product_attention.1} parent=5 // pred_region
        %s125 = ssub.s32 %s17, 1
      $region12: #{scaled_dot_product_attention.1} parent=5 // pred_fallthru
        _
      %p126 = scmp.lt.s32.totalorder %s17, 2
      // Predicated region
      $region13: #{scaled_dot_product_attention.1} parent=5 // pred_check
        %p127 = pneg %p126
      $region14: #{scaled_dot_product_attention.1} parent=5 // pred_check_branch
        %129 = sbr.rel (%p127) target = $region16
      $region15: #{scaled_dot_product_attention.1} parent=5 // pred_region
        // Predicated region
        $region17: #{scaled_dot_product_attention.1} parent=15 // pred_check
          %p130 = pneg %p51
        $region18: #{scaled_dot_product_attention.1} parent=15 // pred_check_branch
          %132 = sbr.rel (%p130) target = $region20
        $region19: #{scaled_dot_product_attention.1} parent=15 // pred_region
          %s133 = sand.u32 %s41, 1
          %s134 = scalar_lea.sflag [#allocation3], %s133
          %s135 = sand.u32 %s41, 1
          %s136 = smul.addr %s135, 8
          %s137 = scalar_lea.vmem [#allocation2], %s136
          %139 = vsyncadd %s134, 0
          %s140 = sadd.s32 %s25, %s24
          %s141 = smul.addr %s140, 8
          %s142 = scalar_lea.hbm %s0, %s141
          %s144 = sshll.u32 %s142, 4
          %s145 = int_to_ptr.hbm [resolvable:$true] %s144
          %s146 = sshll.u32 %s137, 4
          %s147 = int_to_ptr.vmem [resolvable:$true] %s146
          %149 = dma.hbm_to_vmem [thread:$0]  %s145, 128, %s147, %s134
        $region20: #{scaled_dot_product_attention.1} parent=15 // pred_fallthru
          _
        // Predicated region
        $region21: #{scaled_dot_product_attention.1} parent=15 // pred_check
          %p150 = pneg %p77
        $region22: #{scaled_dot_product_attention.1} parent=15 // pred_check_branch
          %152 = sbr.rel (%p150) target = $region24
        $region23: #{scaled_dot_product_attention.1} parent=15 // pred_region
          %s153 = sand.u32 %s67, 1
          %s154 = scalar_lea.sflag [#allocation6], %s153
          %s155 = sand.u32 %s67, 1
          %s156 = smul.addr %s155, 8
          %s157 = scalar_lea.vmem [#allocation5], %s156
          %159 = vsyncadd %s154, 0
          %s160 = smul.addr %s24, 8
          %s161 = scalar_lea.hbm %s1, %s160
          %s163 = sshll.u32 %s161, 4
          %s164 = int_to_ptr.hbm [resolvable:$true] %s163
          %s165 = sshll.u32 %s157, 4
          %s166 = int_to_ptr.vmem [resolvable:$true] %s165
          %168 = dma.hbm_to_vmem [thread:$0]  %s164, 128, %s166, %s154
        $region24: #{scaled_dot_product_attention.1} parent=15 // pred_fallthru
          _
      $region16: #{scaled_dot_product_attention.1} parent=5 // pred_fallthru
        _
      %p169 = scmp.le.s32.totalorder 1, %s17
      %p170 = scmp.lt.s32.totalorder %s17, 3
      %p171 = pnand %p169, %p170
      %p172 = pneg %p171
      // Predicated region
      $region25: #{scaled_dot_product_attention.1} parent=5 // pred_check
        _
      $region26: #{scaled_dot_product_attention.1} parent=5 // pred_check_branch
        %174 = sbr.rel (%p171) target = $region28
      $region27: #{scaled_dot_product_attention.1} parent=5 // pred_region
        %s175 = ssub.s32 %s17, 1
        %s176 = sand.u32 %s44, 1
        %s177 = scalar_lea.sflag [#allocation3], %s176
        %s178 = sand.u32 %s44, 1
        %s179 = smul.addr %s178, 8
        %s180 = scalar_lea.vmem [#allocation2], %s179
        // Predicated region
        $region29: #{scaled_dot_product_attention.1} parent=27 // pred_check
          %p181 = pneg %p57
        $region30: #{scaled_dot_product_attention.1} parent=27 // pred_check_branch
          %183 = sbr.rel (%p181) target = $region32
        $region31: #{scaled_dot_product_attention.1} parent=27 // pred_region
          %185 = dma.done %s177, 128
        $region32: #{scaled_dot_product_attention.1} parent=27 // pred_fallthru
          _
        %s186 = sand.u32 %s70, 1
        %s187 = scalar_lea.sflag [#allocation6], %s186
        %s188 = sand.u32 %s70, 1
        %s189 = smul.addr %s188, 8
        %s190 = scalar_lea.vmem [#allocation5], %s189
        // Predicated region
        $region33: #{scaled_dot_product_attention.1} parent=27 // pred_check
          %p191 = pneg %p83
        $region34: #{scaled_dot_product_attention.1} parent=27 // pred_check_branch
          %193 = sbr.rel (%p191) target = $region36
        $region35: #{scaled_dot_product_attention.1} parent=27 // pred_region
          %195 = dma.done %s187, 128
        $region36: #{scaled_dot_product_attention.1} parent=27 // pred_fallthru
          _
        %s196 = sand.u32 %s44, 1
        %s197 = scalar_lea.sflag [#allocation3], %s196
        %s198 = sand.u32 %s44, 1
        %s199 = smul.addr %s198, 8
        %s200 = scalar_lea.vmem [#allocation2], %s199
        %p201 = pneg %p57
        %p202 = pneg %p54
        %s203 = sand.u32 %s70, 1
        %s204 = scalar_lea.sflag [#allocation6], %s203
        %s205 = sand.u32 %s70, 1
        %s206 = smul.addr %s205, 8
        %s207 = scalar_lea.vmem [#allocation5], %s206
        %p208 = pneg %p83
        %p209 = pneg %p80
        %p210 = pneg %p111
        %p211 = pneg %p108
        %s212 = sand.u32 %s98, 1
        %s213 = scalar_lea.sflag [#allocation4], %s212
        %s214 = sand.u32 %s98, 1
        %s215 = smul.addr %s214, 8
        %s216 = scalar_lea.vmem [#allocation7], %s215
        %v217 = vld [vmem:[%s180] sm:$0xff]
        %v218 = vld [vmem:[%s190] sm:$0xff]
        %vm219 = vcmask 130048
        %v221 = vsel %vm219, %v217, 0
        %v224 = vsel %vm219, %v218, 0
        %226 = vmatpush.xpose.msra.mxu0 0.0
        %227 = vmatpush.xpose.msra.mxu0 0.0
        %228 = vmatpush.xpose.msra.mxu0 0.0
        %229 = vmatpush.xpose.msra.mxu0 0.0
        %230 = vmatpush.xpose.msra.mxu0 0.0
        %231 = vmatpush.xpose.msra.mxu0 0.0
        %232 = vmatpush.xpose.msra.mxu0 0.0
        %233 = vmatpush.xpose.msra.mxu0 0.0
        %234 = vmatpush.xpose.msra.mxu0 0.0
        %235 = vmatpush.xpose.msra.mxu0 0.0
        %236 = vmatpush.xpose.msra.mxu0 0.0
        %237 = vmatpush.xpose.msra.mxu0 0.0
        %238 = vmatpush.xpose.msra.mxu0 0.0
        %239 = vmatpush.xpose.msra.mxu0 0.0
        %240 = vmatpush.xpose.msra.mxu0 0.0
        %241 = vmatpush.xpose.msra.mxu0 %v224
        %242 = vmatmul.f32.gmra.mxu0 %v221
        %v243 = vpop.f32.mrf.mxu0
        %v244 = vadd.f32 0.0, %v243
        %245 = vdwg.mxu0
        %vm246 = vcmask 64512
        %v247 = vsel %vm246, %v244, -inf
        %248 = vmax.xlane.f32.xlu0 %v247
        %v249 = vpop.xlane.xlu0 %248
        %v250 = vsub.f32 %v244, %v249
        %v251 = vmul.f32 %v250, 1.442695
        %v252 = vpow.pop %v251
        %v253 = vsel %vm246, %v252, 0.0
        %254 = vadd.xlane.f32.xlu0 %v253
        %v255 = vpop.xlane.xlu0 %254
        %v256 = vrcp.pop %v255
        %v257 = vmul.f32 %v255, %v256
        %v258 = vsub.f32 2.0, %v257
        %v259 = vmul.f32 %v256, %v258
        %v260 = vmul.f32 %v252, %v259
        %261 = vst.msk [vmem:[%s216] sm:$0xff] %vm246, %v260
        %s262 = sand.u32 %s98, 1
        %s263 = scalar_lea.sflag [#allocation4], %s262
        %s264 = sand.u32 %s98, 1
        %s265 = smul.addr %s264, 8
        %s266 = scalar_lea.vmem [#allocation7], %s265
        // Predicated region
        $region37: #{scaled_dot_product_attention.1} parent=27 // pred_check
          %p267 = pneg %p108
        $region38: #{scaled_dot_product_attention.1} parent=27 // pred_check_branch
          %269 = sbr.rel (%p267) target = $region40
        $region39: #{scaled_dot_product_attention.1} parent=27 // pred_region
          %271 = vsyncadd %s263, 0
          %s272 = sadd.s32 %s27, %s26
          %s273 = smul.addr %s272, 8
          %s274 = scalar_lea.hbm %s2, %s273
          %s276 = sshll.u32 %s266, 4
          %s277 = int_to_ptr.vmem [resolvable:$true] %s276
          %s278 = sshll.u32 %s274, 4
          %s279 = int_to_ptr.hbm [resolvable:$true] %s278
          %281 = dma.vmem_to_hbm [thread:$0]  %s277, 128, %s279, %s263
        $region40: #{scaled_dot_product_attention.1} parent=27 // pred_fallthru
          _
      $region28: #{scaled_dot_product_attention.1} parent=5 // pred_fallthru
        _
      %p282 = scmp.le.s32.totalorder 2, %s17
      // Predicated region
      $region41: #{scaled_dot_product_attention.1} parent=5 // pred_check
        %p283 = pneg %p282
      $region42: #{scaled_dot_product_attention.1} parent=5 // pred_check_branch
        %285 = sbr.rel (%p283) target = $region44
      $region43: #{scaled_dot_product_attention.1} parent=5 // pred_region
        %s286 = ssub.s32 %s17, 2
        // Predicated region
        $region45: #{scaled_dot_product_attention.1} parent=43 // pred_check
          %p287 = pneg %p114
        $region46: #{scaled_dot_product_attention.1} parent=43 // pred_check_branch
          %289 = sbr.rel (%p287) target = $region48
        $region47: #{scaled_dot_product_attention.1} parent=43 // pred_region
          %s290 = sand.u32 %s99, 1
          %s291 = scalar_lea.sflag [#allocation4], %s290
          %s292 = sand.u32 %s99, 1
          %s293 = smul.addr %s292, 8
          %s294 = scalar_lea.vmem [#allocation7], %s293
          %296 = dma.done %s291, 128
        $region48: #{scaled_dot_product_attention.1} parent=43 // pred_fallthru
          _
      $region44: #{scaled_dot_product_attention.1} parent=5 // pred_fallthru
        _
    $region6: #{scaled_dot_product_attention.1} parent=1 // loop_footer
      %s21 = sadd.s32 1, %s17
    $region7: #{scaled_dot_product_attention.1} parent=1 // loop_footer_branch
      %16 = sbr.rel target = $region3
    $region8: #{scaled_dot_product_attention.1} parent=1 // loop_exit
      _
    %297 = vsyncpa [#allocation3], 1
    %s298 = scalar_lea.sflag [#allocation3], 1
    %299 = vsyncpa %s298, 1
    %300 = vsyncpa [#allocation6], 1
    %s301 = scalar_lea.sflag [#allocation6], 1
    %302 = vsyncpa %s301, 1
    %303 = vsyncpa [#allocation4], 1
    %s304 = scalar_lea.sflag [#allocation4], 1
    %305 = vsyncpa %s304, 1

</llo_original>
